<compile_context>
chip_gen: v5e
topology: v5e:2x2
jax: 0.10.0
libtpu: 0.0.40
codegen_flags: <defaults>
</compile_context>

<pallas_src>
import functools
import math

import jax
import jax.numpy as jnp
from jax.experimental import pallas as pl
from jax.experimental.pallas import tpu as pltpu


def _round_up(n, m):
    return ((n + m - 1) // m) * m


def _hidden_and_arg(x_ref, arg_ref, wd_ref, bd_ref, wa_ref, ba_ref):
    h = jnp.tanh(
        jnp.dot(x_ref[...], wd_ref[...], preferred_element_type=jnp.float32)
        + bd_ref[...].astype(jnp.float32)
    )
    a = jnp.tanh(
        jnp.dot(arg_ref[...], wa_ref[...], preferred_element_type=jnp.float32)
        + ba_ref[...].astype(jnp.float32)
    )
    return h, a


def _logits(h, a, woh_ref, woa_ref, bo_ref):
    return (
        jnp.dot(h.astype(woh_ref.dtype), woh_ref[...],
                preferred_element_type=jnp.float32)
        + jnp.dot(a.astype(woa_ref.dtype), woa_ref[...],
                  preferred_element_type=jnp.float32)
        + bo_ref[...].astype(jnp.float32)
    )


def _head_kernel(x_ref, arg_ref, wd_ref, bd_ref, wa_ref, ba_ref,
                 woh_ref, woa_ref, bo_ref, o_ref):
    h, a = _hidden_and_arg(x_ref, arg_ref, wd_ref, bd_ref, wa_ref, ba_ref)
    o_ref[...] = _logits(h, a, woh_ref, woa_ref, bo_ref).astype(o_ref.dtype)


def _head_repr_kernel(x_ref, arg_ref, wd_ref, bd_ref, wa_ref, ba_ref,
                      woh_ref, woa_ref, bo_ref, o_ref, repr_ref, *, hidden):
    h, a = _hidden_and_arg(x_ref, arg_ref, wd_ref, bd_ref, wa_ref, ba_ref)
    o_ref[...] = _logits(h, a, woh_ref, woa_ref, bo_ref).astype(o_ref.dtype)
    repr_ref[:, :hidden] = h.astype(repr_ref.dtype)
    repr_ref[:, hidden:] = a.astype(repr_ref.dtype)


def joint_arg_classification_head(x, arg_feature, params, *,
                                  return_sent_repr=False, block_m=None):
    """Pallas implementation of JointArgClassificationHead.forward (eval mode).

    Args:
      x:           (B, T, hidden_size) float array.
      arg_feature: (B, T, arg_feature_size) float array.
      params: dict with
        dense_w (H, H), dense_b (H,),
        arg_w   (A, A), arg_b   (A,),
        out_w   (H + A, num_labels), out_b (num_labels,)
        -- weights are (in, out), i.e. torch nn.Linear.weight transposed.
      return_sent_repr: if True also return the (B, T, H + A) concat repr.

    Returns:
      (B, T, num_labels) logits, or (logits, sent_repr) if return_sent_repr.
    """
    B, T, H = x.shape
    A = arg_feature.shape[-1]

    wd = params["dense_w"]
    bd = params["dense_b"].reshape(1, H)
    wa = params["arg_w"]
    ba = params["arg_b"].reshape(1, A)
    wo = params["out_w"]
    assert wo.shape[0] == H + A, "out_proj expects hidden + arg_feature input"
    C = wo.shape[1]
    bo = params["out_b"].reshape(1, C)
    woh = wo[:H]      # (H, C)
    woa = wo[H:]      # (A, C)

    # --- flatten the time-distributed axes (B, T, F) -> (B*T, F) -------------
    M = B * T
    x2d = x.reshape(M, H)
    arg2d = arg_feature.reshape(M, A)

    itemsize = x.dtype.itemsize
    repr_cols = (H + A) if return_sent_repr else 0
    act_cols = H + A + C + repr_cols

    # --- row-block size: ~2 MiB of activations per block, multiple of 8 ------
    if block_m is None:
        target = max(8, (2 * 1024 * 1024) // max(act_cols * itemsize, 1))
        block_m = min(_round_up(min(target, 1024), 8), _round_up(M, 8))
        if M > 8:
            # keep at least 2 grid steps so v7x's two TensorCores both get work
            block_m = min(block_m, _round_up(-(-M // 2), 8))
    block_m = max(8, _round_up(int(block_m), 8))

    M_pad = _round_up(M, block_m)
    if M_pad != M:
        x2d = jnp.pad(x2d, ((0, M_pad - M), (0, 0)))
        arg2d = jnp.pad(arg2d, ((0, M_pad - M), (0, 0)))
    grid = (M_pad // block_m,)

    # --- VMEM budget: double-buffered activation blocks + resident weights ---
    weight_bytes = (H * H + A * A + (H + A) * C + 2 * H + 2 * A + C) * itemsize
    block_bytes = 2 * block_m * act_cols * itemsize
    vmem_limit = int(min(100 * 2**20,
                         max(32 * 2**20, 2 * (block_bytes + 2 * weight_bytes))))

    flops = 2 * M * (H * H + A * A + (H + A) * C)
    transcendentals = M * (H + A)
    bytes_accessed = itemsize * (
        M * (H + A + C + repr_cols) + H * H + A * A + (H + A) * C + H + A + C)

    in_specs = [
        pl.BlockSpec((block_m, H), lambda i: (i, 0)),   # x rows
        pl.BlockSpec((block_m, A), lambda i: (i, 0)),   # arg rows
        pl.BlockSpec((H, H), lambda i: (0, 0)),         # dense weight
        pl.BlockSpec((1, H), lambda i: (0, 0)),         # dense bias
        pl.BlockSpec((A, A), lambda i: (0, 0)),         # arg_dense weight
        pl.BlockSpec((1, A), lambda i: (0, 0)),         # arg_dense bias
        pl.BlockSpec((H, C), lambda i: (0, 0)),         # out_proj weight (hidden part)
        pl.BlockSpec((A, C), lambda i: (0, 0)),         # out_proj weight (arg part)
        pl.BlockSpec((1, C), lambda i: (0, 0)),         # out_proj bias
    ]

    if return_sent_repr:
        kernel = functools.partial(_head_repr_kernel, hidden=H)
        out_shape = (jax.ShapeDtypeStruct((M_pad, C), x.dtype),
                     jax.ShapeDtypeStruct((M_pad, H + A), x.dtype))
        out_specs = (pl.BlockSpec((block_m, C), lambda i: (i, 0)),
                     pl.BlockSpec((block_m, H + A), lambda i: (i, 0)))
    else:
        kernel = _head_kernel
        out_shape = jax.ShapeDtypeStruct((M_pad, C), x.dtype)
        out_specs = pl.BlockSpec((block_m, C), lambda i: (i, 0))

    result = pl.pallas_call(
        kernel,
        out_shape=out_shape,
        grid_spec=pltpu.PrefetchScalarGridSpec(
            num_scalar_prefetch=0,
            grid=grid,
            in_specs=in_specs,
            out_specs=out_specs,
        ),
        compiler_params=pltpu.CompilerParams(
            dimension_semantics=("parallel",),
            vmem_limit_bytes=vmem_limit,
        ),
        cost_estimate=pl.CostEstimate(
            flops=int(flops),
            transcendentals=int(transcendentals),
            bytes_accessed=int(bytes_accessed),
        ),
    )(x2d, arg2d, wd, bd, wa, ba, woh, woa, bo)

    if return_sent_repr:
        logits, sent_repr = result
        return (logits[:M].reshape(B, T, C),
                sent_repr[:M].reshape(B, T, H + A))
    return result[:M].reshape(B, T, C)


def init_params(key, hidden_size, arg_feature_size, num_labels,
                dtype=jnp.float32):
    """Deterministic xavier-ish init; weights stored (in, out)."""
    ks = jax.random.split(key, 6)

    def lin(kw, fan_in, fan_out):
        std = math.sqrt(2.0 / (fan_in + fan_out))
        return std * jax.random.normal(kw, (fan_in, fan_out), dtype=dtype)

    return {
        "dense_w": lin(ks[0], hidden_size, hidden_size),
        "dense_b": 0.01 * jax.random.normal(ks[1], (hidden_size,), dtype=dtype),
        "arg_w": lin(ks[2], arg_feature_size, arg_feature_size),
        "arg_b": 0.01 * jax.random.normal(ks[3], (arg_feature_size,), dtype=dtype),
        "out_w": lin(ks[4], hidden_size + arg_feature_size, num_labels),
        "out_b": 0.01 * jax.random.normal(ks[5], (num_labels,), dtype=dtype),
    }


if __name__ == "__main__":
    key = jax.random.PRNGKey(0)
    k_x, k_a, k_p = jax.random.split(key, 3)

    # Small shapes consistent with the module: batch=2, seq=8, hidden=32,
    # arg_feature=16, num_labels=3 (sentence_repr_size == hidden_size).
    B, T, H, A, C = 2, 8, 32, 16, 3

    x = jax.random.normal(k_x, (B, T, H), dtype=jnp.float32)
    arg_feature = jax.random.normal(k_a, (B, T, A), dtype=jnp.float32)
    params = init_params(k_p, H, A, C)

    # --- Pallas kernel (default path) ----------------------------------------
    logits = joint_arg_classification_head(x, arg_feature, params)
    logits = jax.block_until_ready(logits)

    # --- pure-JAX reference (eval-mode forward) -------------------------------
    x2 = x.reshape(-1, H)
    a2 = arg_feature.reshape(-1, A)
    h_ref = jnp.tanh(x2 @ params["dense_w"] + params["dense_b"])
    a_ref = jnp.tanh(a2 @ params["arg_w"] + params["arg_b"])
    cat_ref = jnp.concatenate([h_ref, a_ref], axis=-1)
    logits_ref = (cat_ref @ params["out_w"] + params["out_b"]).reshape(B, T, C)

    assert logits.shape == (B, T, C)
    assert jnp.allclose(logits, logits_ref, atol=1e-4, rtol=1e-4), \
        "logits mismatch vs reference"

    # --- return_sent_repr=True path -------------------------------------------
    logits2, sent_repr = joint_arg_classification_head(
        x, arg_feature, params, return_sent_repr=True)
    logits2, sent_repr = jax.block_until_ready((logits2, sent_repr))
    assert jnp.allclose(logits2, logits_ref, atol=1e-4, rtol=1e-4)
    assert jnp.allclose(sent_repr, cat_ref.reshape(B, T, H + A),
                        atol=1e-4, rtol=1e-4), "sent_repr mismatch vs reference"

    print("KERNEL_OK")
</pallas_src>

<mosaic_0001>
module attributes {stable_mosaic.version = 11 : i64} {
  func.func @_head_kernel(%arg0: i32, %arg1: memref<8x32xf32, #tpu.memory_space<vmem>>, %arg2: memref<8x16xf32, #tpu.memory_space<vmem>>, %arg3: memref<32x32xf32, #tpu.memory_space<vmem>>, %arg4: memref<1x32xf32, #tpu.memory_space<vmem>>, %arg5: memref<16x16xf32, #tpu.memory_space<vmem>>, %arg6: memref<1x16xf32, #tpu.memory_space<vmem>>, %arg7: memref<32x3xf32, #tpu.memory_space<vmem>>, %arg8: memref<16x3xf32, #tpu.memory_space<vmem>>, %arg9: memref<1x3xf32, #tpu.memory_space<vmem>>, %arg10: memref<8x3xf32, #tpu.memory_space<vmem>>) attributes {dimension_semantics = [#tpu.dimension_semantics<parallel>], iteration_bounds = array<i64: 2>, scalar_prefetch = 0 : i64, scratch_operands = 0 : i64, tpu.core_type = #tpu.core_type<tc>, window_params = [{transform_indices = @transform_0, window_bounds = array<i64: 8, 32>}, {transform_indices = @transform_1, window_bounds = array<i64: 8, 16>}, {pipeline_mode = #tpu.pipeline_mode<synchronous>, transform_indices = @transform_2, window_bounds = array<i64: 32, 32>}, {pipeline_mode = #tpu.pipeline_mode<synchronous>, transform_indices = @transform_3, window_bounds = array<i64: 1, 32>}, {pipeline_mode = #tpu.pipeline_mode<synchronous>, transform_indices = @transform_4, window_bounds = array<i64: 16, 16>}, {pipeline_mode = #tpu.pipeline_mode<synchronous>, transform_indices = @transform_5, window_bounds = array<i64: 1, 16>}, {pipeline_mode = #tpu.pipeline_mode<synchronous>, transform_indices = @transform_6, window_bounds = array<i64: 32, 3>}, {pipeline_mode = #tpu.pipeline_mode<synchronous>, transform_indices = @transform_7, window_bounds = array<i64: 16, 3>}, {pipeline_mode = #tpu.pipeline_mode<synchronous>, transform_indices = @transform_8, window_bounds = array<i64: 1, 3>}, {transform_indices = @transform_9, window_bounds = array<i64: 8, 3>}]} {
    %c0 = arith.constant 0 : index
    %c0_0 = arith.constant 0 : index
    %0 = vector.load %arg1[%c0, %c0_0] : memref<8x32xf32, #tpu.memory_space<vmem>>, vector<8x32xf32>
    %c0_1 = arith.constant 0 : index
    %c0_2 = arith.constant 0 : index
    %1 = vector.load %arg3[%c0_1, %c0_2] : memref<32x32xf32, #tpu.memory_space<vmem>>, vector<32x32xf32>
    %cst = arith.constant dense<0.000000e+00> : vector<8x32xf32>
    %2 = tpu.matmul %0, %1, %cst {dimension_numbers = #tpu.dot_dimension_numbers<[1], [0], [0], [1], [0, 0, 1, 1], [], []>} : vector<8x32xf32>, vector<32x32xf32>, vector<8x32xf32> -> vector<8x32xf32>
    %c0_3 = arith.constant 0 : index
    %c0_4 = arith.constant 0 : index
    %3 = vector.load %arg4[%c0_3, %c0_4] : memref<1x32xf32, #tpu.memory_space<vmem>>, vector<1x32xf32>
    %4 = vector.broadcast %3 : vector<1x32xf32> to vector<8x32xf32>
    %5 = arith.addf %2, %4 : vector<8x32xf32>
    %6 = math.tanh %5 : vector<8x32xf32>
    %c0_5 = arith.constant 0 : index
    %c0_6 = arith.constant 0 : index
    %7 = vector.load %arg2[%c0_5, %c0_6] : memref<8x16xf32, #tpu.memory_space<vmem>>, vector<8x16xf32>
    %c0_7 = arith.constant 0 : index
    %c0_8 = arith.constant 0 : index
    %8 = vector.load %arg5[%c0_7, %c0_8] : memref<16x16xf32, #tpu.memory_space<vmem>>, vector<16x16xf32>
    %cst_9 = arith.constant dense<0.000000e+00> : vector<8x16xf32>
    %9 = tpu.matmul %7, %8, %cst_9 {dimension_numbers = #tpu.dot_dimension_numbers<[1], [0], [0], [1], [0, 0, 1, 1], [], []>} : vector<8x16xf32>, vector<16x16xf32>, vector<8x16xf32> -> vector<8x16xf32>
    %c0_10 = arith.constant 0 : index
    %c0_11 = arith.constant 0 : index
    %10 = vector.load %arg6[%c0_10, %c0_11] : memref<1x16xf32, #tpu.memory_space<vmem>>, vector<1x16xf32>
    %11 = vector.broadcast %10 : vector<1x16xf32> to vector<8x16xf32>
    %12 = arith.addf %9, %11 : vector<8x16xf32>
    %13 = math.tanh %12 : vector<8x16xf32>
    %c0_12 = arith.constant 0 : index
    %c0_13 = arith.constant 0 : index
    %14 = vector.load %arg7[%c0_12, %c0_13] : memref<32x3xf32, #tpu.memory_space<vmem>>, vector<32x3xf32>
    %cst_14 = arith.constant dense<0.000000e+00> : vector<8x3xf32>
    %15 = tpu.matmul %6, %14, %cst_14 {dimension_numbers = #tpu.dot_dimension_numbers<[1], [0], [0], [1], [0, 0, 1, 1], [], []>} : vector<8x32xf32>, vector<32x3xf32>, vector<8x3xf32> -> vector<8x3xf32>
    %c0_15 = arith.constant 0 : index
    %c0_16 = arith.constant 0 : index
    %16 = vector.load %arg8[%c0_15, %c0_16] : memref<16x3xf32, #tpu.memory_space<vmem>>, vector<16x3xf32>
    %cst_17 = arith.constant dense<0.000000e+00> : vector<8x3xf32>
    %17 = tpu.matmul %13, %16, %cst_17 {dimension_numbers = #tpu.dot_dimension_numbers<[1], [0], [0], [1], [0, 0, 1, 1], [], []>} : vector<8x16xf32>, vector<16x3xf32>, vector<8x3xf32> -> vector<8x3xf32>
    %18 = arith.addf %15, %17 : vector<8x3xf32>
    %c0_18 = arith.constant 0 : index
    %c0_19 = arith.constant 0 : index
    %19 = vector.load %arg9[%c0_18, %c0_19] : memref<1x3xf32, #tpu.memory_space<vmem>>, vector<1x3xf32>
    %20 = vector.broadcast %19 : vector<1x3xf32> to vector<8x3xf32>
    %21 = arith.addf %18, %20 : vector<8x3xf32>
    %c0_20 = arith.constant 0 : index
    %c0_21 = arith.constant 0 : index
    %22 = vector.load %arg10[%c0_20, %c0_21] : memref<8x3xf32, #tpu.memory_space<vmem>>, vector<8x3xf32>
    tpu.vector_store %arg10[%c0_20, %c0_21], %21 {strides = array<i32>} : memref<8x3xf32, #tpu.memory_space<vmem>>, vector<8x3xf32>,
    return
  }
  func.func @transform_0(%arg0: i32) -> (i32, i32) {
    %c0_i32 = arith.constant 0 : i32
    %c0_i32_0 = arith.constant 0 : i32
    return %arg0, %c0_i32 : i32, i32
  }
  func.func @transform_1(%arg0: i32) -> (i32, i32) {
    %c0_i32 = arith.constant 0 : i32
    %c0_i32_0 = arith.constant 0 : i32
    return %arg0, %c0_i32 : i32, i32
  }
  func.func @transform_2(%arg0: i32) -> (i32, i32) {
    %c0_i32 = arith.constant 0 : i32
    %c0_i32_0 = arith.constant 0 : i32
    %c0_i32_1 = arith.constant 0 : i32
    return %c0_i32, %c0_i32_0 : i32, i32
  }
  func.func @transform_3(%arg0: i32) -> (i32, i32) {
    %c0_i32 = arith.constant 0 : i32
    %c0_i32_0 = arith.constant 0 : i32
    %c0_i32_1 = arith.constant 0 : i32
    return %c0_i32, %c0_i32_0 : i32, i32
  }
  func.func @transform_4(%arg0: i32) -> (i32, i32) {
    %c0_i32 = arith.constant 0 : i32
    %c0_i32_0 = arith.constant 0 : i32
    %c0_i32_1 = arith.constant 0 : i32
    return %c0_i32, %c0_i32_0 : i32, i32
  }
  func.func @transform_5(%arg0: i32) -> (i32, i32) {
    %c0_i32 = arith.constant 0 : i32
    %c0_i32_0 = arith.constant 0 : i32
    %c0_i32_1 = arith.constant 0 : i32
    return %c0_i32, %c0_i32_0 : i32, i32
  }
  func.func @transform_6(%arg0: i32) -> (i32, i32) {
    %c0_i32 = arith.constant 0 : i32
    %c0_i32_0 = arith.constant 0 : i32
    %c0_i32_1 = arith.constant 0 : i32
    return %c0_i32, %c0_i32_0 : i32, i32
  }
  func.func @transform_7(%arg0: i32) -> (i32, i32) {
    %c0_i32 = arith.constant 0 : i32
    %c0_i32_0 = arith.constant 0 : i32
    %c0_i32_1 = arith.constant 0 : i32
    return %c0_i32, %c0_i32_0 : i32, i32
  }
  func.func @transform_8(%arg0: i32) -> (i32, i32) {
    %c0_i32 = arith.constant 0 : i32
    %c0_i32_0 = arith.constant 0 : i32
    %c0_i32_1 = arith.constant 0 : i32
    return %c0_i32, %c0_i32_0 : i32, i32
  }
  func.func @transform_9(%arg0: i32) -> (i32, i32) {
    %c0_i32 = arith.constant 0 : i32
    %c0_i32_0 = arith.constant 0 : i32
    return %arg0, %c0_i32 : i32, i32
  }
}

</mosaic_0001>

<llo_original>
// kernel: tpu_custom_call.1
$region0: #{tpu_custom_call.1}
  #allocation0 [shape = 'u32[]', space=smem, size = 0x4, offset = 0x4, fixed_abs, tag = 'smem constant byte address 0x4 - core index']
  #allocation1 [shape = 'u32[72,128]{1,0:T(1,128)}', space=vmem, size = 0x9000, scoped, tag = 'internal scratch']
  %s0 = inlined_call_operand.vmem [shape: f32[16,32], index: 0, kind: input, shape index: {}]
  %s1 = inlined_call_operand.hbm [shape: f32[16,16], index: 1, kind: input, shape index: {}]
  %s2 = inlined_call_operand.vmem [shape: f32[32,32], index: 2, kind: input, shape index: {}]
  %s3 = inlined_call_operand.vmem [shape: f32[1,32], index: 3, kind: input, shape index: {}]
  %s4 = inlined_call_operand.hbm [shape: f32[16,16], index: 4, kind: input, shape index: {}]
  %s5 = inlined_call_operand.vmem [shape: f32[1,16], index: 5, kind: input, shape index: {}]
  %s6 = inlined_call_operand.vmem [shape: f32[32,3], index: 6, kind: input, shape index: {}]
  %s7 = inlined_call_operand.vmem [shape: f32[16,3], index: 7, kind: input, shape index: {}]
  %s8 = inlined_call_operand.vmem [shape: f32[1,3], index: 8, kind: input, shape index: {}]
  %s9 = inlined_call_operand.vmem [shape: f32[16,3], index: 9, kind: output, shape index: {}]
  %s10 = sld [smem:[#allocation0]]
  $region77: #{tpu_custom_call.1} parent=0
    _
  %s12 = ssub.s32 1, %s10
  %s13 = scalar_select 0, %s12, %s10
  $region1: #{tpu_custom_call.1} parent=0
    #allocation2 [shape = 'u8[8192]{0}', space=vmem, size = 0x2000, scoped, tag = 'input window, operand 1']
    #allocation3 [shape = 's32[2]{0}', space=sflag, size = 0x8, scoped, tag = 'scoped memory for tpu_custom_call.1']
    #allocation4 [shape = 'u8[8192]{0}', space=vmem, size = 0x2000, scoped, tag = 'input window, operand 4, single buffered']
    #allocation5 [shape = 's32[1]{0}', space=sflag, size = 0x4, scoped, tag = 'scoped memory for tpu_custom_call.1']
    %14 = vsyncpa [#allocation3], 0
    %s15 = scalar_lea.sflag [#allocation3], 1
    %16 = vsyncpa %s15, 0
    %17 = vsyncpa [#allocation5], 0
    loop: start=0, step=1, limit=4
    $region2: #{tpu_custom_call.1} parent=1 // loop_pre_header
      _
    $region3: #{tpu_custom_call.1} parent=1 // loop_header
      %s19 = sphi 0, %s23
      %p20 = scmp.ge.s32.totalorder %s19, 4
      %s29 = sphi 0, %s31
      %s32 = sphi 0, %s29
      %s33 = sphi 0, %s32
      %s49 = sphi 0, %s33
      %s55 = sphi 0, %s57
      %s58 = sphi 0, %s55
      %s59 = sphi 0, %s58
      %s75 = sphi 0, %s59
      %s79 = sphi 0, %s79
      %s81 = sphi 0, %s79
      %s82 = sphi 0, %s81
      %s96 = sphi 0, %s82
      %s100 = sphi 0, %s100
      %s102 = sphi 0, %s100
      %s103 = sphi 0, %s102
      %s117 = sphi 0, %s103
      %s121 = sphi 0, %s121
      %s123 = sphi 0, %s121
      %s124 = sphi 0, %s123
      %s138 = sphi 0, %s124
      %s142 = sphi 0, %s142
      %s144 = sphi 0, %s142
      %s145 = sphi 0, %s144
      %s159 = sphi 0, %s145
      %s163 = sphi 0, %s163
      %s165 = sphi 0, %s163
      %s166 = sphi 0, %s165
      %s180 = sphi 0, %s166
      %s184 = sphi 0, %s184
      %s186 = sphi 0, %s184
      %s187 = sphi 0, %s186
      %s201 = sphi 0, %s187
      %s205 = sphi 0, %s205
      %s207 = sphi 0, %s205
      %s208 = sphi 0, %s207
      %s222 = sphi 0, %s208
      %s228 = sphi 0, %s230
      %s231 = sphi 0, %s228
      %s232 = sphi 0, %s231
      %s248 = sphi 0, %s232
    $region4: #{tpu_custom_call.1} parent=1 // loop_header_branch
      %22 = sbr.rel (%p20) target = $region8
    $region5: #{tpu_custom_call.1} parent=1 // loop_body
      %s24 = ssub.s32 %s19, 1
      %s25 = ssub.s32 %s19, 2
      %s26 = sadd.s32 %s19, 1
      %s27 = ssub.s32 %s19, %s26
      %p28 = scmp.eq.s32.totalorder %s27, 0
      %s30 = sadd.s32 %s29, 1
      %s31 = scalar_select %p28, %s29, %s30
      %p34 = pneg %p28
      %p35 = scmp.eq.s32.totalorder %s19, 1
      %p36 = por %p34, %p35
      %p37 = scmp.ne.s32.totalorder %s29, %s32
      %p38 = scmp.eq.s32.totalorder %s19, 0
      %p39 = por %p37, %p38
      %p40 = scmp.ne.s32.totalorder %s29, %s32
      %p41 = scmp.eq.s32.totalorder %s24, 1
      %p42 = por %p40, %p41
      %p43 = scmp.ne.s32.totalorder %s32, %s33
      %p44 = scmp.eq.s32.totalorder %s24, 0
      %p45 = por %p43, %p44
      %p46 = scmp.ne.s32.totalorder %s32, %s33
      %p47 = scmp.eq.s32.totalorder %s25, 1
      %p48 = por %p46, %p47
      %p50 = scmp.ne.s32.totalorder %s33, %s49
      %p51 = scmp.eq.s32.totalorder %s25, 0
      %p52 = por %p50, %p51
      %s53 = ssub.s32 %s19, %s26
      %p54 = scmp.eq.s32.totalorder %s53, 0
      %s56 = sadd.s32 %s55, 1
      %s57 = scalar_select %p54, %s55, %s56
      %p60 = pneg %p54
      %p61 = scmp.eq.s32.totalorder %s19, 1
      %p62 = por %p60, %p61
      %p63 = scmp.ne.s32.totalorder %s55, %s58
      %p64 = scmp.eq.s32.totalorder %s19, 0
      %p65 = por %p63, %p64
      %p66 = scmp.ne.s32.totalorder %s55, %s58
      %p67 = scmp.eq.s32.totalorder %s24, 1
      %p68 = por %p66, %p67
      %p69 = scmp.ne.s32.totalorder %s58, %s59
      %p70 = scmp.eq.s32.totalorder %s24, 0
      %p71 = por %p69, %p70
      %p72 = scmp.ne.s32.totalorder %s58, %s59
      %p73 = scmp.eq.s32.totalorder %s25, 1
      %p74 = por %p72, %p73
      %p76 = scmp.ne.s32.totalorder %s59, %s75
      %p77 = scmp.eq.s32.totalorder %s25, 0
      %p78 = por %p76, %p77
      %s80 = sadd.s32 %s79, 1
      %p83 = scmp.eq.s32.totalorder %s19, 1
      %p84 = scmp.ne.s32.totalorder %s79, %s81
      %p85 = scmp.eq.s32.totalorder %s19, 0
      %p86 = por %p84, %p85
      %p87 = scmp.ne.s32.totalorder %s79, %s81
      %p88 = scmp.eq.s32.totalorder %s24, 1
      %p89 = por %p87, %p88
      %p90 = scmp.ne.s32.totalorder %s81, %s82
      %p91 = scmp.eq.s32.totalorder %s24, 0
      %p92 = por %p90, %p91
      %p93 = scmp.ne.s32.totalorder %s81, %s82
      %p94 = scmp.eq.s32.totalorder %s25, 1
      %p95 = por %p93, %p94
      %p97 = scmp.ne.s32.totalorder %s82, %s96
      %p98 = scmp.eq.s32.totalorder %s25, 0
      %p99 = por %p97, %p98
      %s101 = sadd.s32 %s100, 1
      %p104 = scmp.eq.s32.totalorder %s19, 1
      %p105 = scmp.ne.s32.totalorder %s100, %s102
      %p106 = scmp.eq.s32.totalorder %s19, 0
      %p107 = por %p105, %p106
      %p108 = scmp.ne.s32.totalorder %s100, %s102
      %p109 = scmp.eq.s32.totalorder %s24, 1
      %p110 = por %p108, %p109
      %p111 = scmp.ne.s32.totalorder %s102, %s103
      %p112 = scmp.eq.s32.totalorder %s24, 0
      %p113 = por %p111, %p112
      %p114 = scmp.ne.s32.totalorder %s102, %s103
      %p115 = scmp.eq.s32.totalorder %s25, 1
      %p116 = por %p114, %p115
      %p118 = scmp.ne.s32.totalorder %s103, %s117
      %p119 = scmp.eq.s32.totalorder %s25, 0
      %p120 = por %p118, %p119
      %s122 = sadd.s32 %s121, 1
      %p125 = scmp.eq.s32.totalorder %s19, 1
      %p126 = scmp.ne.s32.totalorder %s121, %s123
      %p127 = scmp.eq.s32.totalorder %s19, 0
      %p128 = por %p126, %p127
      %p129 = scmp.ne.s32.totalorder %s121, %s123
      %p130 = scmp.eq.s32.totalorder %s24, 1
      %p131 = por %p129, %p130
      %p132 = scmp.ne.s32.totalorder %s123, %s124
      %p133 = scmp.eq.s32.totalorder %s24, 0
      %p134 = por %p132, %p133
      %p135 = scmp.ne.s32.totalorder %s123, %s124
      %p136 = scmp.eq.s32.totalorder %s25, 1
      %p137 = por %p135, %p136
      %p139 = scmp.ne.s32.totalorder %s124, %s138
      %p140 = scmp.eq.s32.totalorder %s25, 0
      %p141 = por %p139, %p140
      %s143 = sadd.s32 %s142, 1
      %p146 = scmp.eq.s32.totalorder %s19, 1
      %p147 = scmp.ne.s32.totalorder %s142, %s144
      %p148 = scmp.eq.s32.totalorder %s19, 0
      %p149 = por %p147, %p148
      %p150 = scmp.ne.s32.totalorder %s142, %s144
      %p151 = scmp.eq.s32.totalorder %s24, 1
      %p152 = por %p150, %p151
      %p153 = scmp.ne.s32.totalorder %s144, %s145
      %p154 = scmp.eq.s32.totalorder %s24, 0
      %p155 = por %p153, %p154
      %p156 = scmp.ne.s32.totalorder %s144, %s145
      %p157 = scmp.eq.s32.totalorder %s25, 1
      %p158 = por %p156, %p157
      %p160 = scmp.ne.s32.totalorder %s145, %s159
      %p161 = scmp.eq.s32.totalorder %s25, 0
      %p162 = por %p160, %p161
      %s164 = sadd.s32 %s163, 1
      %p167 = scmp.eq.s32.totalorder %s19, 1
      %p168 = scmp.ne.s32.totalorder %s163, %s165
      %p169 = scmp.eq.s32.totalorder %s19, 0
      %p170 = por %p168, %p169
      %p171 = scmp.ne.s32.totalorder %s163, %s165
      %p172 = scmp.eq.s32.totalorder %s24, 1
      %p173 = por %p171, %p172
      %p174 = scmp.ne.s32.totalorder %s165, %s166
      %p175 = scmp.eq.s32.totalorder %s24, 0
      %p176 = por %p174, %p175
      %p177 = scmp.ne.s32.totalorder %s165, %s166
      %p178 = scmp.eq.s32.totalorder %s25, 1
      %p179 = por %p177, %p178
      %p181 = scmp.ne.s32.totalorder %s166, %s180
      %p182 = scmp.eq.s32.totalorder %s25, 0
      %p183 = por %p181, %p182
      %s185 = sadd.s32 %s184, 1
      %p188 = scmp.eq.s32.totalorder %s19, 1
      %p189 = scmp.ne.s32.totalorder %s184, %s186
      %p190 = scmp.eq.s32.totalorder %s19, 0
      %p191 = por %p189, %p190
      %p192 = scmp.ne.s32.totalorder %s184, %s186
      %p193 = scmp.eq.s32.totalorder %s24, 1
      %p194 = por %p192, %p193
      %p195 = scmp.ne.s32.totalorder %s186, %s187
      %p196 = scmp.eq.s32.totalorder %s24, 0
      %p197 = por %p195, %p196
      %p198 = scmp.ne.s32.totalorder %s186, %s187
      %p199 = scmp.eq.s32.totalorder %s25, 1
      %p200 = por %p198, %p199
      %p202 = scmp.ne.s32.totalorder %s187, %s201
      %p203 = scmp.eq.s32.totalorder %s25, 0
      %p204 = por %p202, %p203
      %s206 = sadd.s32 %s205, 1
      %p209 = scmp.eq.s32.totalorder %s19, 1
      %p210 = scmp.ne.s32.totalorder %s205, %s207
      %p211 = scmp.eq.s32.totalorder %s19, 0
      %p212 = por %p210, %p211
      %p213 = scmp.ne.s32.totalorder %s205, %s207
      %p214 = scmp.eq.s32.totalorder %s24, 1
      %p215 = por %p213, %p214
      %p216 = scmp.ne.s32.totalorder %s207, %s208
      %p217 = scmp.eq.s32.totalorder %s24, 0
      %p218 = por %p216, %p217
      %p219 = scmp.ne.s32.totalorder %s207, %s208
      %p220 = scmp.eq.s32.totalorder %s25, 1
      %p221 = por %p219, %p220
      %p223 = scmp.ne.s32.totalorder %s208, %s222
      %p224 = scmp.eq.s32.totalorder %s25, 0
      %p225 = por %p223, %p224
      %s226 = ssub.s32 %s19, %s26
      %p227 = scmp.eq.s32.totalorder %s226, 0
      %s229 = sadd.s32 %s228, 1
      %s230 = scalar_select %p227, %s228, %s229
      %p233 = pneg %p227
      %p234 = scmp.eq.s32.totalorder %s19, 1
      %p235 = por %p233, %p234
      %p236 = scmp.ne.s32.totalorder %s228, %s231
      %p237 = scmp.eq.s32.totalorder %s19, 0
      %p238 = por %p236, %p237
      %p239 = scmp.ne.s32.totalorder %s228, %s231
      %p240 = scmp.eq.s32.totalorder %s24, 1
      %p241 = por %p239, %p240
      %p242 = scmp.ne.s32.totalorder %s231, %s232
      %p243 = scmp.eq.s32.totalorder %s24, 0
      %p244 = por %p242, %p243
      %p245 = scmp.ne.s32.totalorder %s231, %s232
      %p246 = scmp.eq.s32.totalorder %s25, 1
      %p247 = por %p245, %p246
      %p249 = scmp.ne.s32.totalorder %s232, %s248
      %p250 = scmp.eq.s32.totalorder %s25, 0
      %p251 = por %p249, %p250
      %p252 = scmp.le.s32.totalorder 1, %s19
      %p253 = scmp.lt.s32.totalorder %s19, 3
      %p254 = pnand %p252, %p253
      %p255 = pneg %p254
      // Predicated region
      $region9: #{tpu_custom_call.1} parent=5 // pred_check
        _
      $region10: #{tpu_custom_call.1} parent=5 // pred_check_branch
        %257 = sbr.rel (%p254) target = $region12
      $region11: #{tpu_custom_call.1} parent=5 // pred_region
        %s258 = ssub.s32 %s19, 1
        // Predicated region
        $region13: #{tpu_custom_call.1} parent=11 // pred_check
          %p259 = pneg %p92
        $region14: #{tpu_custom_call.1} parent=11 // pred_check_branch
          %261 = sbr.rel (%p259) target = $region16
        $region15: #{tpu_custom_call.1} parent=11 // pred_region
          _
        $region16: #{tpu_custom_call.1} parent=11 // pred_fallthru
          _
        // Predicated region
        $region17: #{tpu_custom_call.1} parent=11 // pred_check
          %p262 = pneg %p113
        $region18: #{tpu_custom_call.1} parent=11 // pred_check_branch
          %264 = sbr.rel (%p262) target = $region20
        $region19: #{tpu_custom_call.1} parent=11 // pred_region
          _
        $region20: #{tpu_custom_call.1} parent=11 // pred_fallthru
          _
        // Predicated region
        $region21: #{tpu_custom_call.1} parent=11 // pred_check
          %p265 = pneg %p134
        $region22: #{tpu_custom_call.1} parent=11 // pred_check_branch
          %267 = sbr.rel (%p265) target = $region24
        $region23: #{tpu_custom_call.1} parent=11 // pred_region
          %269 = vsyncadd [#allocation5], 0
          %s270 = sshll.u32 %s4, 4
          %s271 = int_to_ptr.hbm [resolvable:$true] %s270
          %s272 = sshll.u32 [#allocation4], 4
          %s273 = int_to_ptr.vmem [resolvable:$true] %s272
          %278 = dma.hbm_to_vmem [thread:$0]  %s271, 256, %s273, [#allocation5], 128, 128, 8
        $region24: #{tpu_custom_call.1} parent=11 // pred_fallthru
          _
        // Predicated region
        $region25: #{tpu_custom_call.1} parent=11 // pred_check
          %p279 = pneg %p155
        $region26: #{tpu_custom_call.1} parent=11 // pred_check_branch
          %281 = sbr.rel (%p279) target = $region28
        $region27: #{tpu_custom_call.1} parent=11 // pred_region
          _
        $region28: #{tpu_custom_call.1} parent=11 // pred_fallthru
          _
        // Predicated region
        $region29: #{tpu_custom_call.1} parent=11 // pred_check
          %p282 = pneg %p176
        $region30: #{tpu_custom_call.1} parent=11 // pred_check_branch
          %284 = sbr.rel (%p282) target = $region32
        $region31: #{tpu_custom_call.1} parent=11 // pred_region
          _
        $region32: #{tpu_custom_call.1} parent=11 // pred_fallthru
          _
        // Predicated region
        $region33: #{tpu_custom_call.1} parent=11 // pred_check
          %p285 = pneg %p197
        $region34: #{tpu_custom_call.1} parent=11 // pred_check_branch
          %287 = sbr.rel (%p285) target = $region36
        $region35: #{tpu_custom_call.1} parent=11 // pred_region
          _
        $region36: #{tpu_custom_call.1} parent=11 // pred_fallthru
          _
        // Predicated region
        $region37: #{tpu_custom_call.1} parent=11 // pred_check
          %p288 = pneg %p218
        $region38: #{tpu_custom_call.1} parent=11 // pred_check_branch
          %290 = sbr.rel (%p288) target = $region40
        $region39: #{tpu_custom_call.1} parent=11 // pred_region
          _
        $region40: #{tpu_custom_call.1} parent=11 // pred_fallthru
          _
      $region12: #{tpu_custom_call.1} parent=5 // pred_fallthru
        _
      %p291 = scmp.lt.s32.totalorder %s19, 2
      // Predicated region
      $region41: #{tpu_custom_call.1} parent=5 // pred_check
        %p292 = pneg %p291
      $region42: #{tpu_custom_call.1} parent=5 // pred_check_branch
        %294 = sbr.rel (%p292) target = $region44
      $region43: #{tpu_custom_call.1} parent=5 // pred_region
        // Predicated region
        $region45: #{tpu_custom_call.1} parent=43 // pred_check
          %p295 = pneg %p39
        $region46: #{tpu_custom_call.1} parent=43 // pred_check_branch
          %297 = sbr.rel (%p295) target = $region48
        $region47: #{tpu_custom_call.1} parent=43 // pred_region
          %p298 = scmp.lt.s32.totalorder %s19, 1
          %s299 = scalar_select %p298, %s19, 1
          %s300 = smul.addr %s299, 8
          %s301 = scalar_lea.vmem %s0, %s300
        $region48: #{tpu_custom_call.1} parent=43 // pred_fallthru
          _
        // Predicated region
        $region49: #{tpu_custom_call.1} parent=43 // pred_check
          %p302 = pneg %p65
        $region50: #{tpu_custom_call.1} parent=43 // pred_check_branch
          %304 = sbr.rel (%p302) target = $region52
        $region51: #{tpu_custom_call.1} parent=43 // pred_region
          %s305 = sand.u32 %s55, 1
          %s306 = scalar_lea.sflag [#allocation3], %s305
          %s307 = sand.u32 %s55, 1
          %s308 = smul.addr %s307, 8
          %s309 = scalar_lea.vmem [#allocation2], %s308
          %311 = vsyncadd %s306, 0
          %s312 = smul.addr %s19, 8
          %s313 = scalar_lea.hbm %s1, %s312
          %s315 = sshll.u32 %s313, 4
          %s316 = int_to_ptr.hbm [resolvable:$true] %s315
          %s317 = sshll.u32 %s309, 4
          %s318 = int_to_ptr.vmem [resolvable:$true] %s317
          %320 = dma.hbm_to_vmem [thread:$0]  %s316, 128, %s318, %s306
        $region52: #{tpu_custom_call.1} parent=43 // pred_fallthru
          _
      $region44: #{tpu_custom_call.1} parent=5 // pred_fallthru
        _
      %p321 = scmp.le.s32.totalorder 1, %s19
      %p322 = scmp.lt.s32.totalorder %s19, 3
      %p323 = pnand %p321, %p322
      %p324 = pneg %p323
      // Predicated region
      $region53: #{tpu_custom_call.1} parent=5 // pred_check
        _
      $region54: #{tpu_custom_call.1} parent=5 // pred_check_branch
        %326 = sbr.rel (%p323) target = $region56
      $region55: #{tpu_custom_call.1} parent=5 // pred_region
        %s327 = ssub.s32 %s19, 1
        %s328 = sand.u32 %s58, 1
        %s329 = scalar_lea.sflag [#allocation3], %s328
        %s330 = sand.u32 %s58, 1
        %s331 = smul.addr %s330, 8
        %s332 = scalar_lea.vmem [#allocation2], %s331
        // Predicated region
        $region57: #{tpu_custom_call.1} parent=55 // pred_check
          %p333 = pneg %p71
        $region58: #{tpu_custom_call.1} parent=55 // pred_check_branch
          %335 = sbr.rel (%p333) target = $region60
        $region59: #{tpu_custom_call.1} parent=55 // pred_region
          %337 = dma.done %s329, 128
        $region60: #{tpu_custom_call.1} parent=55 // pred_fallthru
          _
        // Predicated region
        $region61: #{tpu_custom_call.1} parent=55 // pred_check
          %p338 = pneg %p134
        $region62: #{tpu_custom_call.1} parent=55 // pred_check_branch
          %340 = sbr.rel (%p338) target = $region64
        $region63: #{tpu_custom_call.1} parent=55 // pred_region
          %342 = dma.done [#allocation5], 256
        $region64: #{tpu_custom_call.1} parent=55 // pred_fallthru
          _
        %p343 = scmp.lt.s32.totalorder %s24, 1
        %s344 = scalar_select %p343, %s24, 1
        %s345 = smul.addr %s344, 8
        %s346 = scalar_lea.vmem %s0, %s345
        %p347 = pneg %p45
        %p348 = pneg %p42
        %s349 = sand.u32 %s58, 1
        %s350 = scalar_lea.sflag [#allocation3], %s349
        %s351 = sand.u32 %s58, 1
        %s352 = smul.addr %s351, 8
        %s353 = scalar_lea.vmem [#allocation2], %s352
        %p354 = pneg %p71
        %p355 = pneg %p68
        %p356 = pneg %p92
        %p357 = pneg %p89
        %p358 = pneg %p113
        %p359 = pneg %p110
        %p360 = pneg %p134
        %p361 = pneg %p131
        %p362 = pneg %p155
        %p363 = pneg %p152
        %p364 = pneg %p176
        %p365 = pneg %p173
        %p366 = pneg %p197
        %p367 = pneg %p194
        %p368 = pneg %p218
        %p369 = pneg %p215
        %p370 = pneg %p244
        %p371 = pneg %p241
        %p372 = scmp.lt.s32.totalorder %s24, 1
        %s373 = scalar_select %p372, %s24, 1
        %s374 = smul.addr %s373, 8
        %s375 = scalar_lea.vmem %s9, %s374
        %p376 = scmp.lt.s32.totalorder %s24, 1
        %s377 = scalar_select %p376, %s24, 1
        %s378 = smul.addr %s377, 8
        %s379 = scalar_lea.vmem %s0, %s378
        %p380 = scmp.lt.s32.totalorder %s24, 1
        %s381 = scalar_select %p380, %s24, 1
        %s382 = smul.addr %s381, 8
        %s383 = scalar_lea.vmem %s9, %s382
        %v384 = vld [vmem:[%s379] sm:$0xff]
        %v385 = vld [vmem:[%s2] sm:$0xff]
        %v386 = vld [vmem:[%s2 + $0x8] sm:$0xff]
        %v387 = vld [vmem:[%s2 + $0x10] sm:$0xff]
        %v388 = vld [vmem:[%s2 + $0x18] sm:$0xff]
        %v389 = vld [vmem:[%s3] sm:$0x1]
        %v391 = vperm.slane %v389, 0
        %vm393 = vcmask 261120
        %v395 = vsel %vm393, %v384, 0
        %397 = vmatpush.msra.mxu0 0.0
        %398 = vmatpush.msra.mxu0 0.0
        %399 = vmatpush.msra.mxu0 0.0
        %400 = vmatpush.msra.mxu0 0.0
        %401 = vmatpush.msra.mxu0 0.0
        %402 = vmatpush.msra.mxu0 0.0
        %403 = vmatpush.msra.mxu0 0.0
        %404 = vmatpush.msra.mxu0 0.0
        %405 = vmatpush.msra.mxu0 0.0
        %406 = vmatpush.msra.mxu0 0.0
        %407 = vmatpush.msra.mxu0 0.0
        %408 = vmatpush.msra.mxu0 0.0
        %409 = vmatpush.msra.mxu0 %v388
        %410 = vmatpush.msra.mxu0 %v387
        %411 = vmatpush.msra.mxu0 %v386
        %412 = vmatpush.msra.mxu0 %v385
        %413 = vmatmul.f32.gmra.mxu0 %v395
        %v414 = vpop.f32.mrf.mxu0
        %v415 = vadd.f32 %v391, %v414
        %416 = vdwg.mxu0
        %v417 = vtanh.pop %v415
        %v418 = vld [vmem:[%s332] sm:$0xff]
        %v419 = vld [vmem:[#allocation4] sm:$0xff]
        %v420 = vld [vmem:[#allocation4 + $0x8] sm:$0xff]
        %v421 = vld [vmem:[%s5] sm:$0x1]
        %v423 = vperm.slane %v421, 0
        %vm425 = vcmask 130048
        %v427 = vsel %vm425, %v418, 0
        %429 = vmatpush.msra.mxu0 0.0
        %430 = vmatpush.msra.mxu0 0.0
        %431 = vmatpush.msra.mxu0 0.0
        %432 = vmatpush.msra.mxu0 0.0
        %433 = vmatpush.msra.mxu0 0.0
        %434 = vmatpush.msra.mxu0 0.0
        %435 = vmatpush.msra.mxu0 0.0
        %436 = vmatpush.msra.mxu0 0.0
        %437 = vmatpush.msra.mxu0 0.0
        %438 = vmatpush.msra.mxu0 0.0
        %439 = vmatpush.msra.mxu0 0.0
        %440 = vmatpush.msra.mxu0 0.0
        %441 = vmatpush.msra.mxu0 0.0
        %442 = vmatpush.msra.mxu0 0.0
        %443 = vmatpush.msra.mxu0 %v420
        %444 = vmatpush.msra.mxu0 %v419
        %445 = vmatmul.f32.gmra.mxu0 %v427
        %v446 = vpop.f32.mrf.mxu0
        %v447 = vadd.f32 %v423, %v446
        %448 = vdwg.mxu0
        %v449 = vtanh.pop %v447
        %v450 = vld [vmem:[%s6] sm:$0xff]
        %v451 = vld [vmem:[%s6 + $0x8] sm:$0xff]
        %v452 = vld [vmem:[%s6 + $0x10] sm:$0xff]
        %v453 = vld [vmem:[%s6 + $0x18] sm:$0xff]
        %v454 = vld [vmem:[%s7] sm:$0xff]
        %v455 = vld [vmem:[%s7 + $0x8] sm:$0xff]
        %v457 = vsel %vm425, %v449, 0
        %459 = vmatpush.msra.mxu0 0.0
        %460 = vmatpush.msra.mxu0 0.0
        %461 = vmatpush.msra.mxu0 0.0
        %462 = vmatpush.msra.mxu0 0.0
        %463 = vmatpush.msra.mxu0 0.0
        %464 = vmatpush.msra.mxu0 0.0
        %465 = vmatpush.msra.mxu0 0.0
        %466 = vmatpush.msra.mxu0 0.0
        %467 = vmatpush.msra.mxu0 0.0
        %468 = vmatpush.msra.mxu0 0.0
        %469 = vmatpush.msra.mxu0 0.0
        %470 = vmatpush.msra.mxu0 0.0
        %471 = vmatpush.msra.mxu0 0.0
        %472 = vmatpush.msra.mxu0 0.0
        %473 = vmatpush.msra.mxu0 %v455
        %474 = vmatpush.msra.mxu0 %v454
        %475 = vmatmul.f32.gmra.mxu0 %v457
        %v476 = vpop.f32.mrf.mxu0
        %v477 = vadd.f32 0.0, %v476
        %478 = vdwg.mxu0
        %v480 = vsel %vm393, %v417, 0
        %482 = vmatpush.msra.mxu0 0.0
        %483 = vmatpush.msra.mxu0 0.0
        %484 = vmatpush.msra.mxu0 0.0
        %485 = vmatpush.msra.mxu0 0.0
        %486 = vmatpush.msra.mxu0 0.0
        %487 = vmatpush.msra.mxu0 0.0
        %488 = vmatpush.msra.mxu0 0.0
        %489 = vmatpush.msra.mxu0 0.0
        %490 = vmatpush.msra.mxu0 0.0
        %491 = vmatpush.msra.mxu0 0.0
        %492 = vmatpush.msra.mxu0 0.0
        %493 = vmatpush.msra.mxu0 0.0
        %494 = vmatpush.msra.mxu0 %v453
        %495 = vmatpush.msra.mxu0 %v452
        %496 = vmatpush.msra.mxu0 %v451
        %497 = vmatpush.msra.mxu0 %v450
        %498 = vmatmul.f32.gmra.mxu0 %v480
        %v499 = vpop.f32.mrf.mxu0
        %v500 = vadd.f32 %v477, %v499
        %501 = vdwg.mxu0
        %v502 = vld [vmem:[%s8] sm:$0x1]
        %v504 = vperm.slane %v502, 0
        %v506 = vadd.f32 %v500, %v504
        %vm507 = vcmask 23552
        %508 = vst.msk [vmem:[%s383] sm:$0xff] %vm507, %v506
        %p509 = scmp.lt.s32.totalorder %s24, 1
        %s510 = scalar_select %p509, %s24, 1
        %s511 = smul.addr %s510, 8
        %s512 = scalar_lea.vmem %s9, %s511
        // Predicated region
        $region65: #{tpu_custom_call.1} parent=55 // pred_check
          %p513 = pneg %p241
        $region66: #{tpu_custom_call.1} parent=55 // pred_check_branch
          %515 = sbr.rel (%p513) target = $region68
        $region67: #{tpu_custom_call.1} parent=55 // pred_region
          _
        $region68: #{tpu_custom_call.1} parent=55 // pred_fallthru
          _
      $region56: #{tpu_custom_call.1} parent=5 // pred_fallthru
        _
      %p516 = scmp.le.s32.totalorder 2, %s19
      // Predicated region
      $region69: #{tpu_custom_call.1} parent=5 // pred_check
        %p517 = pneg %p516
      $region70: #{tpu_custom_call.1} parent=5 // pred_check_branch
        %519 = sbr.rel (%p517) target = $region72
      $region71: #{tpu_custom_call.1} parent=5 // pred_region
        %s520 = ssub.s32 %s19, 2
        // Predicated region
        $region73: #{tpu_custom_call.1} parent=71 // pred_check
          %p521 = pneg %p247
        $region74: #{tpu_custom_call.1} parent=71 // pred_check_branch
          %523 = sbr.rel (%p521) target = $region76
        $region75: #{tpu_custom_call.1} parent=71 // pred_region
          %p524 = scmp.lt.s32.totalorder %s25, 1
          %s525 = scalar_select %p524, %s25, 1
          %s526 = smul.addr %s525, 8
          %s527 = scalar_lea.vmem %s9, %s526
        $region76: #{tpu_custom_call.1} parent=71 // pred_fallthru
          _
      $region72: #{tpu_custom_call.1} parent=5 // pred_fallthru
        _
    $region6: #{tpu_custom_call.1} parent=1 // loop_footer
      %s23 = sadd.s32 1, %s19
    $region7: #{tpu_custom_call.1} parent=1 // loop_footer_branch
      %18 = sbr.rel target = $region3
    $region8: #{tpu_custom_call.1} parent=1 // loop_exit
      _
    %528 = vsyncpa [#allocation3], 1
    %s529 = scalar_lea.sflag [#allocation3], 1
    %530 = vsyncpa %s529, 1
    %531 = vsyncpa [#allocation5], 1

</llo_original>
